<compile_context>
chip_gen: v7x
topology: tpu7x:2x2x1
jax: 0.10.0
libtpu: 0.0.40
codegen_flags: <defaults>
</compile_context>

<pallas_src>
import functools

import jax
import jax.numpy as jnp
from jax.experimental import pallas as pl
from jax.experimental.pallas import tpu as pltpu

_MIB = 1024 * 1024
_TILE_VMEM_BUDGET = 32 * _MIB     # per-step working-set target (all generations)
_WEIGHT_VMEM_BUDGET = 20 * _MIB   # max (double-buffered) weight tile before K tiling


def _round_up(x, m):
    return ((x + m - 1) // m) * m


def _cdiv(a, b):
    return (a + b - 1) // b


# ---------------------------------------------------------------------------
# Kernels
# ---------------------------------------------------------------------------
def _proj_kernel_k_resident(p_ref, w_ref, b_ref, o_ref):
    """Weight-stationary projection: one long-K MXU matmul per (tm, tn) tile.

    No K grid axis -> no per-step accumulator RMW, no scratch; bias folded
    into the (single) store.
    """
    acc = jnp.dot(p_ref[...], w_ref[...], preferred_element_type=jnp.float32)
    o_ref[...] = (acc + b_ref[...]).astype(o_ref.dtype)


def _proj_kernel_k_tiled(p_ref, w_ref, b_ref, o_ref, acc_ref):
    """Fallback when the weight tile does not fit in VMEM.

    K is the innermost ("arbitrary") grid axis; f32 scratch accumulator; bias
    folded into the k == 0 step instead of a separate broadcast store.
    """
    k = pl.program_id(2)
    contrib = jnp.dot(p_ref[...], w_ref[...], preferred_element_type=jnp.float32)

    @pl.when(k == 0)
    def _():
        acc_ref[...] = contrib + b_ref[...]

    @pl.when(k > 0)
    def _():
        acc_ref[...] += contrib

    @pl.when(k == pl.num_programs(2) - 1)
    def _():
        o_ref[...] = acc_ref[...].astype(o_ref.dtype)


# ---------------------------------------------------------------------------
# Wrapper
# ---------------------------------------------------------------------------
def patch_embed_3d(x, weight, bias, patch_size, *,
                   tm=1024,
                   compute_dtype=jnp.bfloat16,
                   flatten_embedding=True):
    """Forward pass of PatchEmbed3D (norm=Identity).

    x:      (B, C, W, H, D)
    weight: (E, C, pW, pH, pD)   (Conv3d weight layout)
    bias:   (E,)
    returns (B, N, E) in x.dtype (or (B, Wo, Ho, Do, E) if not flatten_embedding),
            N = (W/pW)*(H/pH)*(D/pD)
    """
    B, C, W, H, D = x.shape
    pW, pH, pD = patch_size
    assert W % pW == 0 and H % pH == 0 and D % pD == 0
    Wo, Ho, Do = W // pW, H // pH, D // pD
    N = Wo * Ho * Do
    E = weight.shape[0]
    K = C * pW * pH * pD
    M = B * N
    out_dtype = x.dtype

    in_bytes = jnp.dtype(compute_dtype).itemsize
    out_bytes = jnp.dtype(out_dtype).itemsize

    # --- patch extraction: token order (wo, ho, do), feature order (c, i, j, k) --
    # TODO(synk): gather (tm, K) patch slabs in-kernel via memory_space=pl.ANY +
    # pltpu.make_async_copy to fully avoid the (M, K) HBM materialization; for
    # now we request XLA to fuse this producer into the Pallas input DMA via
    # allow_input_fusion below.
    xr = x.reshape(B, C, Wo, pW, Ho, pH, Do, pD)
    xr = xr.transpose(0, 2, 4, 6, 1, 3, 5, 7)            # (B, Wo, Ho, Do, C, pW, pH, pD)
    patches = xr.reshape(M, K).astype(compute_dtype)     # (M, K)
    w_mat = weight.reshape(E, K).T.astype(compute_dtype)  # (K, E)
    b_row = bias.reshape(1, E).astype(jnp.float32)        # bias stays f32

    # --- lane-dense padding of E / K (multiples of 128) -------------------------
    E_pad = _round_up(E, 128)
    K_pad = _round_up(K, 128)

    # E tile: whole padded E by default, so each patch tile is streamed once.
    if E_pad <= 2048:
        tn = E_pad
    else:
        tn = 1024
        E_pad = _round_up(E, tn)

    # K tile: keep the full weight resident (no K grid axis) whenever it fits.
    if 2 * K_pad * tn * in_bytes <= _WEIGHT_VMEM_BUDGET:
        tk = K_pad
    else:
        tk = min(K_pad, 1024)
        K_pad = _round_up(K, tk)
    nk = K_pad // tk
    k_resident = nk == 1

    # --- choose tm: >=2 parallel M steps (v7x megacore), minimal padding waste,
    #     working set under the VMEM budget --------------------------------------
    def _working_set_bytes(tm_):
        return (2 * tm_ * tk * in_bytes          # patches (double buffered)
                + 2 * tk * tn * in_bytes         # weight  (double buffered)
                + 2 * tm_ * tn * out_bytes       # output  (double buffered)
                + 2 * tn * 4                     # bias row
                + (0 if k_resident else tm_ * tn * 4))  # f32 scratch accumulator

    nt = max(_cdiv(M, tm), 2 if M >= 16 else 1)
    while True:
        tm_cur = _round_up(_cdiv(M, nt), 8)
        if _working_set_bytes(tm_cur) <= _TILE_VMEM_BUDGET or tm_cur == 8:
            break
        nt += 1
    tm = tm_cur
    M_pad = nt * tm

    # --- pad operands to the tiled shapes ----------------------------------------
    if (M_pad, K_pad) != (M, K):
        patches = jnp.pad(patches, ((0, M_pad - M), (0, K_pad - K)))
    if (K_pad, E_pad) != (K, E):
        w_mat = jnp.pad(w_mat, ((0, K_pad - K), (0, E_pad - E)))
    if E_pad != E:
        b_row = jnp.pad(b_row, ((0, 0), (0, E_pad - E)))

    ne = E_pad // tn

    # vmem limit: actual working set + headroom, capped well under v7x's 64 MiB.
    vmem_limit = int(min(max(_working_set_bytes(tm) * 13 // 10 + 2 * _MIB,
                             16 * _MIB),
                         48 * _MIB))

    if k_resident:
        kernel = _proj_kernel_k_resident
        grid = (nt, ne)
        in_specs = [
            pl.BlockSpec((tm, K_pad), lambda i, j: (i, 0)),   # patches
            pl.BlockSpec((K_pad, tn), lambda i, j: (0, j)),   # weight (stationary)
            pl.BlockSpec((1, tn), lambda i, j: (0, j)),       # bias row
        ]
        out_specs = pl.BlockSpec((tm, tn), lambda i, j: (i, j))
        scratch_shapes = []
        dim_sem = ("parallel", "parallel")
    else:
        kernel = _proj_kernel_k_tiled
        grid = (nt, ne, nk)                                   # K innermost (reduction)
        in_specs = [
            pl.BlockSpec((tm, tk), lambda i, j, k: (i, k)),
            pl.BlockSpec((tk, tn), lambda i, j, k: (k, j)),
            pl.BlockSpec((1, tn), lambda i, j, k: (0, j)),
        ]
        out_specs = pl.BlockSpec((tm, tn), lambda i, j, k: (i, j))
        scratch_shapes = [pltpu.VMEM((tm, tn), jnp.float32)]
        dim_sem = ("parallel", "parallel", "arbitrary")

    out = pl.pallas_call(
        kernel,
        out_shape=jax.ShapeDtypeStruct((M_pad, E_pad), out_dtype),
        grid_spec=pltpu.PrefetchScalarGridSpec(
            num_scalar_prefetch=0,
            grid=grid,
            in_specs=in_specs,
            out_specs=out_specs,
            scratch_shapes=scratch_shapes,
        ),
        compiler_params=pltpu.CompilerParams(
            dimension_semantics=dim_sem,
            vmem_limit_bytes=vmem_limit,
            allow_input_fusion=[True, False, False],
        ),
    )(patches, w_mat, b_row)

    out = out[:M, :E].reshape(B, N, E)
    if not flatten_embedding:
        out = out.reshape(B, Wo, Ho, Do, E)
    return out


# ---------------------------------------------------------------------------
# Plain-JAX reference (f32, HIGHEST precision) for correctness checking
# ---------------------------------------------------------------------------
def _reference(x, weight, bias, patch_size):
    B, C, W, H, D = x.shape
    pW, pH, pD = patch_size
    Wo, Ho, Do = W // pW, H // pH, D // pD
    E = weight.shape[0]
    xr = x.reshape(B, C, Wo, pW, Ho, pH, Do, pD)
    xr = xr.transpose(0, 2, 4, 6, 1, 3, 5, 7).reshape(B, Wo * Ho * Do, -1)
    w_mat = weight.reshape(E, -1)
    out = jnp.einsum("bnk,ek->bne", xr, w_mat,
                     precision=jax.lax.Precision.HIGHEST)
    return out + bias[None, None, :]


if __name__ == "__main__":
    # Small config consistent with the module:
    #   img_size=16, patch_size=8, in_chans=4, embed_dim=32, batch=2
    B, C = 2, 4
    img_size = (16, 16, 16)
    patch_size = (8, 8, 8)
    embed_dim = 32

    key = jax.random.PRNGKey(0)
    kx, kw, kb = jax.random.split(key, 3)

    x = jax.random.normal(kx, (B, C, *img_size), dtype=jnp.float32)
    fan_in = C * patch_size[0] * patch_size[1] * patch_size[2]
    weight = jax.random.normal(
        kw, (embed_dim, C, *patch_size), dtype=jnp.float32
    ) * (1.0 / fan_in) ** 0.5
    bias = jax.random.normal(kb, (embed_dim,), dtype=jnp.float32) * 0.01

    fwd = jax.jit(functools.partial(patch_embed_3d, patch_size=patch_size))
    out = jax.block_until_ready(fwd(x, weight, bias))

    ref = _reference(x, weight, bias, patch_size)
    assert out.shape == ref.shape == (B, 2 * 2 * 2, embed_dim)
    # bf16 streamed operands with f32 accumulation -> modest tolerance vs f32 ref.
    max_err = float(jnp.max(jnp.abs(out - ref)))
    assert jnp.allclose(out, ref, atol=3e-2, rtol=3e-2), max_err

    print("KERNEL_OK")
</pallas_src>

<mosaic_0001>
module attributes {stable_mosaic.version = 11 : i64} {
  func.func @_proj_kernel_k_resident(%arg0: i32, %arg1: i32, %arg2: memref<8x2048xbf16, #tpu.memory_space<vmem>>, %arg3: memref<2048x128xbf16, #tpu.memory_space<vmem>>, %arg4: memref<1x128xf32, #tpu.memory_space<vmem>>, %arg5: memref<8x128xf32, #tpu.memory_space<vmem>>) attributes {dimension_semantics = [#tpu.dimension_semantics<parallel>, #tpu.dimension_semantics<parallel>], iteration_bounds = array<i64: 2, 1>, scalar_prefetch = 0 : i64, scratch_operands = 0 : i64, tpu.core_type = #tpu.core_type<tc>, window_params = [{transform_indices = @transform_0, window_bounds = array<i64: 8, 2048>}, {transform_indices = @transform_1, window_bounds = array<i64: 2048, 128>}, {transform_indices = @transform_2, window_bounds = array<i64: 1, 128>}, {transform_indices = @transform_3, window_bounds = array<i64: 8, 128>}]} {
    %c0 = arith.constant 0 : index
    %c0_0 = arith.constant 0 : index
    %0 = vector.load %arg2[%c0, %c0_0] : memref<8x2048xbf16, #tpu.memory_space<vmem>>, vector<8x2048xbf16>
    %c0_1 = arith.constant 0 : index
    %c0_2 = arith.constant 0 : index
    %1 = vector.load %arg3[%c0_1, %c0_2] : memref<2048x128xbf16, #tpu.memory_space<vmem>>, vector<2048x128xbf16>
    %cst = arith.constant dense<0.000000e+00> : vector<8x128xf32>
    %2 = tpu.matmul %0, %1, %cst {dimension_numbers = #tpu.dot_dimension_numbers<[1], [0], [0], [1], [0, 0, 1, 1], [], []>} : vector<8x2048xbf16>, vector<2048x128xbf16>, vector<8x128xf32> -> vector<8x128xf32>
    %c0_3 = arith.constant 0 : index
    %c0_4 = arith.constant 0 : index
    %3 = vector.load %arg4[%c0_3, %c0_4] : memref<1x128xf32, #tpu.memory_space<vmem>>, vector<1x128xf32>
    %4 = vector.broadcast %3 : vector<1x128xf32> to vector<8x128xf32>
    %5 = arith.addf %2, %4 : vector<8x128xf32>
    %c0_5 = arith.constant 0 : index
    %c0_6 = arith.constant 0 : index
    %6 = vector.load %arg5[%c0_5, %c0_6] : memref<8x128xf32, #tpu.memory_space<vmem>>, vector<8x128xf32>
    tpu.vector_store %arg5[%c0_5, %c0_6], %5 {strides = array<i32>} : memref<8x128xf32, #tpu.memory_space<vmem>>, vector<8x128xf32>,
    return
  }
  func.func @transform_0(%arg0: i32, %arg1: i32) -> (i32, i32) {
    %c0_i32 = arith.constant 0 : i32
    %c0_i32_0 = arith.constant 0 : i32
    return %arg0, %c0_i32 : i32, i32
  }
  func.func @transform_1(%arg0: i32, %arg1: i32) -> (i32, i32) {
    %c0_i32 = arith.constant 0 : i32
    %c0_i32_0 = arith.constant 0 : i32
    return %c0_i32, %arg1 : i32, i32
  }
  func.func @transform_2(%arg0: i32, %arg1: i32) -> (i32, i32) {
    %c0_i32 = arith.constant 0 : i32
    %c0_i32_0 = arith.constant 0 : i32
    return %c0_i32, %arg1 : i32, i32
  }
  func.func @transform_3(%arg0: i32, %arg1: i32) -> (i32, i32) {
    %c0_i32 = arith.constant 0 : i32
    return %arg0, %arg1 : i32, i32
  }
}

</mosaic_0001>

<llo_original>
// kernel: patch_embed_3d.1
$region0: #{patch_embed_3d.1}
  #allocation0 [shape = 'u32[]', space=smem, size = 0x4, offset = 0x4, fixed_abs, tag = 'smem constant byte address 0x4 - core index']
  #allocation1 [shape = 'u32[144,128]{1,0:T(1,128)}', space=vmem, size = 0x12000, scoped, tag = 'internal scratch']
  %s0 = inlined_call_operand.vmem [shape: bf16[16,2048], index: 0, kind: input, shape index: {}]
  %s1 = inlined_call_operand.vmem [shape: bf16[2048,128], index: 1, kind: input, shape index: {}]
  %s2 = inlined_call_operand.vmem [shape: f32[1,128], index: 2, kind: input, shape index: {}]
  %s3 = inlined_call_operand.vmem [shape: f32[16,128], index: 3, kind: output, shape index: {}]
  %s4 = sld [smem:[#allocation0]]
  $region45: #{patch_embed_3d.1} parent=0
    _
  %s6 = ssub.s32 1, %s4
  %s7 = scalar_select 0, %s6, %s4
  loop: start=0, step=1, limit=4
  $region2: #{patch_embed_3d.1} parent=0 // loop_pre_header
    _
  $region3: #{patch_embed_3d.1} parent=0 // loop_header
    %s9 = sphi 0, %s13
    %p10 = scmp.ge.s32.totalorder %s9, 4
    %s16 = sphi 0, %s28
    %s17 = sphi 0, %s24
    %s18 = sphi 0, %s16
    %s19 = sphi 0, %s17
    %s20 = sphi 0, %s18
    %s21 = sphi 0, %s19
    %s31 = sphi 0, %s33
    %s34 = sphi 0, %s31
    %s35 = sphi 0, %s34
    %s51 = sphi 0, %s35
    %s57 = sphi 0, %s59
    %s60 = sphi 0, %s57
    %s61 = sphi 0, %s60
    %s77 = sphi 0, %s61
    %s83 = sphi 0, %s85
    %s86 = sphi 0, %s83
    %s87 = sphi 0, %s86
    %s103 = sphi 0, %s87
    %s111 = sphi 0, %s113
    %s114 = sphi 0, %s111
    %s115 = sphi 0, %s114
    %s131 = sphi 0, %s115
  $region4: #{patch_embed_3d.1} parent=0 // loop_header_branch
    %12 = sbr.rel (%p10) target = $region8
  $region5: #{patch_embed_3d.1} parent=0 // loop_body
    %s14 = ssub.s32 %s9, 1
    %s15 = ssub.s32 %s9, 2
    %s22 = sadd.s32 1, %s17
    %p23 = scmp.ge.s32.totalorder %s22, 1
    %s24 = scalar_select %p23, 0, %s22
    %s25 = sadd.s32 1, %s16
    %s26 = scalar_select %p23, %s25, %s16
    %p27 = scmp.ge.s32.totalorder %s26, 2
    %s28 = scalar_select %p27, 0, %s26
    %s29 = ssub.s32 %s16, %s28
    %p30 = scmp.eq.s32.totalorder %s29, 0
    %s32 = sadd.s32 %s31, 1
    %s33 = scalar_select %p30, %s31, %s32
    %p36 = pneg %p30
    %p37 = scmp.eq.s32.totalorder %s9, 1
    %p38 = por %p36, %p37
    %p39 = scmp.ne.s32.totalorder %s31, %s34
    %p40 = scmp.eq.s32.totalorder %s9, 0
    %p41 = por %p39, %p40
    %p42 = scmp.ne.s32.totalorder %s31, %s34
    %p43 = scmp.eq.s32.totalorder %s14, 1
    %p44 = por %p42, %p43
    %p45 = scmp.ne.s32.totalorder %s34, %s35
    %p46 = scmp.eq.s32.totalorder %s14, 0
    %p47 = por %p45, %p46
    %p48 = scmp.ne.s32.totalorder %s34, %s35
    %p49 = scmp.eq.s32.totalorder %s15, 1
    %p50 = por %p48, %p49
    %p52 = scmp.ne.s32.totalorder %s35, %s51
    %p53 = scmp.eq.s32.totalorder %s15, 0
    %p54 = por %p52, %p53
    %s55 = ssub.s32 %s17, %s24
    %p56 = scmp.eq.s32.totalorder %s55, 0
    %s58 = sadd.s32 %s57, 1
    %s59 = scalar_select %p56, %s57, %s58
    %p62 = pneg %p56
    %p63 = scmp.eq.s32.totalorder %s9, 1
    %p64 = por %p62, %p63
    %p65 = scmp.ne.s32.totalorder %s57, %s60
    %p66 = scmp.eq.s32.totalorder %s9, 0
    %p67 = por %p65, %p66
    %p68 = scmp.ne.s32.totalorder %s57, %s60
    %p69 = scmp.eq.s32.totalorder %s14, 1
    %p70 = por %p68, %p69
    %p71 = scmp.ne.s32.totalorder %s60, %s61
    %p72 = scmp.eq.s32.totalorder %s14, 0
    %p73 = por %p71, %p72
    %p74 = scmp.ne.s32.totalorder %s60, %s61
    %p75 = scmp.eq.s32.totalorder %s15, 1
    %p76 = por %p74, %p75
    %p78 = scmp.ne.s32.totalorder %s61, %s77
    %p79 = scmp.eq.s32.totalorder %s15, 0
    %p80 = por %p78, %p79
    %s81 = ssub.s32 %s17, %s24
    %p82 = scmp.eq.s32.totalorder %s81, 0
    %s84 = sadd.s32 %s83, 1
    %s85 = scalar_select %p82, %s83, %s84
    %p88 = pneg %p82
    %p89 = scmp.eq.s32.totalorder %s9, 1
    %p90 = por %p88, %p89
    %p91 = scmp.ne.s32.totalorder %s83, %s86
    %p92 = scmp.eq.s32.totalorder %s9, 0
    %p93 = por %p91, %p92
    %p94 = scmp.ne.s32.totalorder %s83, %s86
    %p95 = scmp.eq.s32.totalorder %s14, 1
    %p96 = por %p94, %p95
    %p97 = scmp.ne.s32.totalorder %s86, %s87
    %p98 = scmp.eq.s32.totalorder %s14, 0
    %p99 = por %p97, %p98
    %p100 = scmp.ne.s32.totalorder %s86, %s87
    %p101 = scmp.eq.s32.totalorder %s15, 1
    %p102 = por %p100, %p101
    %p104 = scmp.ne.s32.totalorder %s87, %s103
    %p105 = scmp.eq.s32.totalorder %s15, 0
    %p106 = por %p104, %p105
    %s107 = ssub.s32 %s16, %s28
    %s108 = ssub.s32 %s17, %s24
    %s109 = sor.u32 %s107, %s108
    %p110 = scmp.eq.s32.totalorder %s109, 0
    %s112 = sadd.s32 %s111, 1
    %s113 = scalar_select %p110, %s111, %s112
    %p116 = pneg %p110
    %p117 = scmp.eq.s32.totalorder %s9, 1
    %p118 = por %p116, %p117
    %p119 = scmp.ne.s32.totalorder %s111, %s114
    %p120 = scmp.eq.s32.totalorder %s9, 0
    %p121 = por %p119, %p120
    %p122 = scmp.ne.s32.totalorder %s111, %s114
    %p123 = scmp.eq.s32.totalorder %s14, 1
    %p124 = por %p122, %p123
    %p125 = scmp.ne.s32.totalorder %s114, %s115
    %p126 = scmp.eq.s32.totalorder %s14, 0
    %p127 = por %p125, %p126
    %p128 = scmp.ne.s32.totalorder %s114, %s115
    %p129 = scmp.eq.s32.totalorder %s15, 1
    %p130 = por %p128, %p129
    %p132 = scmp.ne.s32.totalorder %s115, %s131
    %p133 = scmp.eq.s32.totalorder %s15, 0
    %p134 = por %p132, %p133
    %p135 = scmp.le.s32.totalorder 1, %s9
    %p136 = scmp.lt.s32.totalorder %s9, 3
    %p137 = pnand %p135, %p136
    %p138 = pneg %p137
    // Predicated region
    $region9: #{patch_embed_3d.1} parent=5 // pred_check
      _
    $region10: #{patch_embed_3d.1} parent=5 // pred_check_branch
      %140 = sbr.rel (%p137) target = $region12
    $region11: #{patch_embed_3d.1} parent=5 // pred_region
      %s141 = ssub.s32 %s9, 1
      // Predicated region
      $region13: #{patch_embed_3d.1} parent=11 // pred_check
        %p142 = pneg %p73
      $region14: #{patch_embed_3d.1} parent=11 // pred_check_branch
        %144 = sbr.rel (%p142) target = $region16
      $region15: #{patch_embed_3d.1} parent=11 // pred_region
        %p145 = scmp.lt.s32.totalorder %s19, 0
        %s146 = scalar_select %p145, %s19, 0
        %s147 = smul.addr %s146, 4
        %s148 = scalar_lea.vmem %s1, %s147
      $region16: #{patch_embed_3d.1} parent=11 // pred_fallthru
        _
      // Predicated region
      $region17: #{patch_embed_3d.1} parent=11 // pred_check
        %p149 = pneg %p99
      $region18: #{patch_embed_3d.1} parent=11 // pred_check_branch
        %151 = sbr.rel (%p149) target = $region20
      $region19: #{patch_embed_3d.1} parent=11 // pred_region
        %p152 = scmp.lt.s32.totalorder %s19, 0
        %s153 = scalar_select %p152, %s19, 0
        %s154 = scalar_lea.vmem %s2, %s153
      $region20: #{patch_embed_3d.1} parent=11 // pred_fallthru
        _
    $region12: #{patch_embed_3d.1} parent=5 // pred_fallthru
      _
    %p155 = scmp.lt.s32.totalorder %s9, 2
    // Predicated region
    $region21: #{patch_embed_3d.1} parent=5 // pred_check
      %p156 = pneg %p155
    $region22: #{patch_embed_3d.1} parent=5 // pred_check_branch
      %158 = sbr.rel (%p156) target = $region24
    $region23: #{patch_embed_3d.1} parent=5 // pred_region
      // Predicated region
      $region25: #{patch_embed_3d.1} parent=23 // pred_check
        %p159 = pneg %p41
      $region26: #{patch_embed_3d.1} parent=23 // pred_check_branch
        %161 = sbr.rel (%p159) target = $region28
      $region27: #{patch_embed_3d.1} parent=23 // pred_region
        %p162 = scmp.lt.s32.totalorder %s16, 1
        %s163 = scalar_select %p162, %s16, 1
        %s164 = smul.addr %s163, 16
        %s165 = smul.addr %s164, 4
        %s166 = scalar_lea.vmem %s0, %s165
      $region28: #{patch_embed_3d.1} parent=23 // pred_fallthru
        _
    $region24: #{patch_embed_3d.1} parent=5 // pred_fallthru
      _
    %p167 = scmp.le.s32.totalorder 1, %s9
    %p168 = scmp.lt.s32.totalorder %s9, 3
    %p169 = pnand %p167, %p168
    %p170 = pneg %p169
    // Predicated region
    $region29: #{patch_embed_3d.1} parent=5 // pred_check
      _
    $region30: #{patch_embed_3d.1} parent=5 // pred_check_branch
      %172 = sbr.rel (%p169) target = $region32
    $region31: #{patch_embed_3d.1} parent=5 // pred_region
      %s173 = ssub.s32 %s9, 1
      %p174 = scmp.lt.s32.totalorder %s18, 1
      %s175 = scalar_select %p174, %s18, 1
      %s176 = smul.addr %s175, 16
      %s177 = smul.addr %s176, 4
      %s178 = scalar_lea.vmem %s0, %s177
      %p179 = pneg %p47
      %p180 = pneg %p44
      %p181 = scmp.lt.s32.totalorder %s19, 0
      %s182 = scalar_select %p181, %s19, 0
      %s183 = smul.addr %s182, 4
      %s184 = scalar_lea.vmem %s1, %s183
      %p185 = pneg %p73
      %p186 = pneg %p70
      %p187 = scmp.lt.s32.totalorder %s19, 0
      %s188 = scalar_select %p187, %s19, 0
      %s189 = scalar_lea.vmem %s2, %s188
      %p190 = pneg %p99
      %p191 = pneg %p96
      %p192 = pneg %p127
      %p193 = pneg %p124
      %p194 = scmp.lt.s32.totalorder %s18, 1
      %s195 = scalar_select %p194, %s18, 1
      %p196 = scmp.lt.s32.totalorder %s19, 0
      %s197 = scalar_select %p196, %s19, 0
      %s198 = sadd.s32 %s197, %s195
      %s199 = smul.addr %s198, 8
      %s200 = scalar_lea.vmem %s3, %s199
      %p201 = scmp.lt.s32.totalorder %s18, 1
      %s202 = scalar_select %p201, %s18, 1
      %s203 = smul.addr %s202, 16
      %s204 = smul.addr %s203, 4
      %s205 = scalar_lea.vmem %s0, %s204
      %p206 = scmp.lt.s32.totalorder %s19, 0
      %s207 = scalar_select %p206, %s19, 0
      %s208 = smul.addr %s207, 4
      %s209 = scalar_lea.vmem %s1, %s208
      %p210 = scmp.lt.s32.totalorder %s19, 0
      %s211 = scalar_select %p210, %s19, 0
      %s212 = scalar_lea.vmem %s2, %s211
      %p213 = scmp.lt.s32.totalorder %s18, 1
      %s214 = scalar_select %p213, %s18, 1
      %p215 = scmp.lt.s32.totalorder %s19, 0
      %s216 = scalar_select %p215, %s19, 0
      %s217 = sadd.s32 %s216, %s214
      %s218 = smul.addr %s217, 8
      %s219 = scalar_lea.vmem %s3, %s218
      %v221 = vld [vmem:[%s205] sm:$0xff]
      %v222 = vld [vmem:[%s205 + $0x8] sm:$0xff]
      %v223 = vld [vmem:[%s205 + $0x10] sm:$0xff]
      %v224 = vld [vmem:[%s205 + $0x18] sm:$0xff]
      %v225 = vld [vmem:[%s205 + $0x20] sm:$0xff]
      %v226 = vld [vmem:[%s205 + $0x28] sm:$0xff]
      %v227 = vld [vmem:[%s205 + $0x30] sm:$0xff]
      %v228 = vld [vmem:[%s205 + $0x38] sm:$0xff]
      %v229 = vld [vmem:[%s209] sm:$0xf]
      %v230 = vld [vmem:[%s209 + $0x4] sm:$0xf]
      %v231 = vld [vmem:[%s209 + $0x8] sm:$0xf]
      %v232 = vld [vmem:[%s209 + $0xc] sm:$0xf]
      %v233 = vld [vmem:[%s209 + $0x10] sm:$0xf]
      %v234 = vld [vmem:[%s209 + $0x14] sm:$0xf]
      %v235 = vld [vmem:[%s209 + $0x18] sm:$0xf]
      %v236 = vld [vmem:[%s209 + $0x1c] sm:$0xf]
      %v237 = vld [vmem:[%s209 + $0x20] sm:$0xf]
      %v238 = vld [vmem:[%s209 + $0x24] sm:$0xf]
      %v239 = vld [vmem:[%s209 + $0x28] sm:$0xf]
      %v240 = vld [vmem:[%s209 + $0x2c] sm:$0xf]
      %v241 = vld [vmem:[%s209 + $0x30] sm:$0xf]
      %v242 = vld [vmem:[%s209 + $0x34] sm:$0xf]
      %v243 = vld [vmem:[%s209 + $0x38] sm:$0xf]
      %v244 = vld [vmem:[%s209 + $0x3c] sm:$0xf]
      %v245 = vld [vmem:[%s209 + $0x40] sm:$0xf]
      %v246 = vld [vmem:[%s209 + $0x44] sm:$0xf]
      %v247 = vld [vmem:[%s209 + $0x48] sm:$0xf]
      %v248 = vld [vmem:[%s209 + $0x4c] sm:$0xf]
      %v249 = vld [vmem:[%s209 + $0x50] sm:$0xf]
      %v250 = vld [vmem:[%s209 + $0x54] sm:$0xf]
      %v251 = vld [vmem:[%s209 + $0x58] sm:$0xf]
      %v252 = vld [vmem:[%s209 + $0x5c] sm:$0xf]
      %v253 = vld [vmem:[%s209 + $0x60] sm:$0xf]
      %v254 = vld [vmem:[%s209 + $0x64] sm:$0xf]
      %v255 = vld [vmem:[%s209 + $0x68] sm:$0xf]
      %v256 = vld [vmem:[%s209 + $0x6c] sm:$0xf]
      %v257 = vld [vmem:[%s209 + $0x70] sm:$0xf]
      %v258 = vld [vmem:[%s209 + $0x74] sm:$0xf]
      %v259 = vld [vmem:[%s209 + $0x78] sm:$0xf]
      %v260 = vld [vmem:[%s209 + $0x7c] sm:$0xf]
      %v261 = vld [vmem:[%s209 + $0x80] sm:$0xf]
      %v262 = vld [vmem:[%s209 + $0x84] sm:$0xf]
      %v263 = vld [vmem:[%s209 + $0x88] sm:$0xf]
      %v264 = vld [vmem:[%s209 + $0x8c] sm:$0xf]
      %v265 = vld [vmem:[%s209 + $0x90] sm:$0xf]
      %v266 = vld [vmem:[%s209 + $0x94] sm:$0xf]
      %v267 = vld [vmem:[%s209 + $0x98] sm:$0xf]
      %v268 = vld [vmem:[%s209 + $0x9c] sm:$0xf]
      %v269 = vld [vmem:[%s209 + $0xa0] sm:$0xf]
      %v270 = vld [vmem:[%s209 + $0xa4] sm:$0xf]
      %v271 = vld [vmem:[%s209 + $0xa8] sm:$0xf]
      %v272 = vld [vmem:[%s209 + $0xac] sm:$0xf]
      %v273 = vld [vmem:[%s209 + $0xb0] sm:$0xf]
      %v274 = vld [vmem:[%s209 + $0xb4] sm:$0xf]
      %v275 = vld [vmem:[%s209 + $0xb8] sm:$0xf]
      %v276 = vld [vmem:[%s209 + $0xbc] sm:$0xf]
      %v277 = vld [vmem:[%s209 + $0xc0] sm:$0xf]
      %v278 = vld [vmem:[%s209 + $0xc4] sm:$0xf]
      %v279 = vld [vmem:[%s209 + $0xc8] sm:$0xf]
      %v280 = vld [vmem:[%s209 + $0xcc] sm:$0xf]
      %v281 = vld [vmem:[%s209 + $0xd0] sm:$0xf]
      %v282 = vld [vmem:[%s209 + $0xd4] sm:$0xf]
      %v283 = vld [vmem:[%s209 + $0xd8] sm:$0xf]
      %v284 = vld [vmem:[%s209 + $0xdc] sm:$0xf]
      %v285 = vld [vmem:[%s209 + $0xe0] sm:$0xf]
      %v286 = vld [vmem:[%s209 + $0xe4] sm:$0xf]
      %v287 = vld [vmem:[%s209 + $0xe8] sm:$0xf]
      %v288 = vld [vmem:[%s209 + $0xec] sm:$0xf]
      %v289 = vld [vmem:[%s209 + $0xf0] sm:$0xf]
      %v290 = vld [vmem:[%s209 + $0xf4] sm:$0xf]
      %v291 = vld [vmem:[%s209 + $0xf8] sm:$0xf]
      %v292 = vld [vmem:[%s209 + $0xfc] sm:$0xf]
      %v293 = vld [vmem:[%s209 + $0x100] sm:$0xf]
      %v294 = vld [vmem:[%s209 + $0x104] sm:$0xf]
      %v295 = vld [vmem:[%s209 + $0x108] sm:$0xf]
      %v296 = vld [vmem:[%s209 + $0x10c] sm:$0xf]
      %v297 = vld [vmem:[%s209 + $0x110] sm:$0xf]
      %v298 = vld [vmem:[%s209 + $0x114] sm:$0xf]
      %v299 = vld [vmem:[%s209 + $0x118] sm:$0xf]
      %v300 = vld [vmem:[%s209 + $0x11c] sm:$0xf]
      %v301 = vld [vmem:[%s209 + $0x120] sm:$0xf]
      %v302 = vld [vmem:[%s209 + $0x124] sm:$0xf]
      %v303 = vld [vmem:[%s209 + $0x128] sm:$0xf]
      %v304 = vld [vmem:[%s209 + $0x12c] sm:$0xf]
      %v305 = vld [vmem:[%s209 + $0x130] sm:$0xf]
      %v306 = vld [vmem:[%s209 + $0x134] sm:$0xf]
      %v307 = vld [vmem:[%s209 + $0x138] sm:$0xf]
      %v308 = vld [vmem:[%s209 + $0x13c] sm:$0xf]
      %v309 = vld [vmem:[%s209 + $0x140] sm:$0xf]
      %v310 = vld [vmem:[%s209 + $0x144] sm:$0xf]
      %v311 = vld [vmem:[%s209 + $0x148] sm:$0xf]
      %v312 = vld [vmem:[%s209 + $0x14c] sm:$0xf]
      %v313 = vld [vmem:[%s209 + $0x150] sm:$0xf]
      %v314 = vld [vmem:[%s209 + $0x154] sm:$0xf]
      %v315 = vld [vmem:[%s209 + $0x158] sm:$0xf]
      %v316 = vld [vmem:[%s209 + $0x15c] sm:$0xf]
      %v317 = vld [vmem:[%s209 + $0x160] sm:$0xf]
      %v318 = vld [vmem:[%s209 + $0x164] sm:$0xf]
      %v319 = vld [vmem:[%s209 + $0x168] sm:$0xf]
      %v320 = vld [vmem:[%s209 + $0x16c] sm:$0xf]
      %v321 = vld [vmem:[%s209 + $0x170] sm:$0xf]
      %v322 = vld [vmem:[%s209 + $0x174] sm:$0xf]
      %v323 = vld [vmem:[%s209 + $0x178] sm:$0xf]
      %v324 = vld [vmem:[%s209 + $0x17c] sm:$0xf]
      %v325 = vld [vmem:[%s209 + $0x180] sm:$0xf]
      %v326 = vld [vmem:[%s209 + $0x184] sm:$0xf]
      %v327 = vld [vmem:[%s209 + $0x188] sm:$0xf]
      %v328 = vld [vmem:[%s209 + $0x18c] sm:$0xf]
      %v329 = vld [vmem:[%s209 + $0x190] sm:$0xf]
      %v330 = vld [vmem:[%s209 + $0x194] sm:$0xf]
      %v331 = vld [vmem:[%s209 + $0x198] sm:$0xf]
      %v332 = vld [vmem:[%s209 + $0x19c] sm:$0xf]
      %v333 = vld [vmem:[%s209 + $0x1a0] sm:$0xf]
      %v334 = vld [vmem:[%s209 + $0x1a4] sm:$0xf]
      %v335 = vld [vmem:[%s209 + $0x1a8] sm:$0xf]
      %v336 = vld [vmem:[%s209 + $0x1ac] sm:$0xf]
      %v337 = vld [vmem:[%s209 + $0x1b0] sm:$0xf]
      %v338 = vld [vmem:[%s209 + $0x1b4] sm:$0xf]
      %v339 = vld [vmem:[%s209 + $0x1b8] sm:$0xf]
      %v340 = vld [vmem:[%s209 + $0x1bc] sm:$0xf]
      %v341 = vld [vmem:[%s209 + $0x1c0] sm:$0xf]
      %v342 = vld [vmem:[%s209 + $0x1c4] sm:$0xf]
      %v343 = vld [vmem:[%s209 + $0x1c8] sm:$0xf]
      %v344 = vld [vmem:[%s209 + $0x1cc] sm:$0xf]
      %v345 = vld [vmem:[%s209 + $0x1d0] sm:$0xf]
      %v346 = vld [vmem:[%s209 + $0x1d4] sm:$0xf]
      %v347 = vld [vmem:[%s209 + $0x1d8] sm:$0xf]
      %v348 = vld [vmem:[%s209 + $0x1dc] sm:$0xf]
      %v349 = vld [vmem:[%s209 + $0x1e0] sm:$0xf]
      %v350 = vld [vmem:[%s209 + $0x1e4] sm:$0xf]
      %v351 = vld [vmem:[%s209 + $0x1e8] sm:$0xf]
      %v352 = vld [vmem:[%s209 + $0x1ec] sm:$0xf]
      %v353 = vld [vmem:[%s209 + $0x1f0] sm:$0xf]
      %v354 = vld [vmem:[%s209 + $0x1f4] sm:$0xf]
      %v355 = vld [vmem:[%s209 + $0x1f8] sm:$0xf]
      %v356 = vld [vmem:[%s209 + $0x1fc] sm:$0xf]
      %v357 = vld [vmem:[%s209 + $0x200] sm:$0xf]
      %v358 = vld [vmem:[%s209 + $0x204] sm:$0xf]
      %v359 = vld [vmem:[%s209 + $0x208] sm:$0xf]
      %v360 = vld [vmem:[%s209 + $0x20c] sm:$0xf]
      %v361 = vld [vmem:[%s209 + $0x210] sm:$0xf]
      %v362 = vld [vmem:[%s209 + $0x214] sm:$0xf]
      %v363 = vld [vmem:[%s209 + $0x218] sm:$0xf]
      %v364 = vld [vmem:[%s209 + $0x21c] sm:$0xf]
      %v365 = vld [vmem:[%s209 + $0x220] sm:$0xf]
      %v366 = vld [vmem:[%s209 + $0x224] sm:$0xf]
      %v367 = vld [vmem:[%s209 + $0x228] sm:$0xf]
      %v368 = vld [vmem:[%s209 + $0x22c] sm:$0xf]
      %v369 = vld [vmem:[%s209 + $0x230] sm:$0xf]
      %v370 = vld [vmem:[%s209 + $0x234] sm:$0xf]
      %v371 = vld [vmem:[%s209 + $0x238] sm:$0xf]
      %v372 = vld [vmem:[%s209 + $0x23c] sm:$0xf]
      %v373 = vld [vmem:[%s209 + $0x240] sm:$0xf]
      %v374 = vld [vmem:[%s209 + $0x244] sm:$0xf]
      %v375 = vld [vmem:[%s209 + $0x248] sm:$0xf]
      %v376 = vld [vmem:[%s209 + $0x24c] sm:$0xf]
      %v377 = vld [vmem:[%s209 + $0x250] sm:$0xf]
      %v378 = vld [vmem:[%s209 + $0x254] sm:$0xf]
      %v379 = vld [vmem:[%s209 + $0x258] sm:$0xf]
      %v380 = vld [vmem:[%s209 + $0x25c] sm:$0xf]
      %v381 = vld [vmem:[%s209 + $0x260] sm:$0xf]
      %v382 = vld [vmem:[%s209 + $0x264] sm:$0xf]
      %v383 = vld [vmem:[%s209 + $0x268] sm:$0xf]
      %v384 = vld [vmem:[%s209 + $0x26c] sm:$0xf]
      %v385 = vld [vmem:[%s209 + $0x270] sm:$0xf]
      %v386 = vld [vmem:[%s209 + $0x274] sm:$0xf]
      %v387 = vld [vmem:[%s209 + $0x278] sm:$0xf]
      %v388 = vld [vmem:[%s209 + $0x27c] sm:$0xf]
      %v389 = vld [vmem:[%s209 + $0x280] sm:$0xf]
      %v390 = vld [vmem:[%s209 + $0x284] sm:$0xf]
      %v391 = vld [vmem:[%s209 + $0x288] sm:$0xf]
      %v392 = vld [vmem:[%s209 + $0x28c] sm:$0xf]
      %v393 = vld [vmem:[%s209 + $0x290] sm:$0xf]
      %v394 = vld [vmem:[%s209 + $0x294] sm:$0xf]
      %v395 = vld [vmem:[%s209 + $0x298] sm:$0xf]
      %v396 = vld [vmem:[%s209 + $0x29c] sm:$0xf]
      %v397 = vld [vmem:[%s209 + $0x2a0] sm:$0xf]
      %v398 = vld [vmem:[%s209 + $0x2a4] sm:$0xf]
      %v399 = vld [vmem:[%s209 + $0x2a8] sm:$0xf]
      %v400 = vld [vmem:[%s209 + $0x2ac] sm:$0xf]
      %v401 = vld [vmem:[%s209 + $0x2b0] sm:$0xf]
      %v402 = vld [vmem:[%s209 + $0x2b4] sm:$0xf]
      %v403 = vld [vmem:[%s209 + $0x2b8] sm:$0xf]
      %v404 = vld [vmem:[%s209 + $0x2bc] sm:$0xf]
      %v405 = vld [vmem:[%s209 + $0x2c0] sm:$0xf]
      %v406 = vld [vmem:[%s209 + $0x2c4] sm:$0xf]
      %v407 = vld [vmem:[%s209 + $0x2c8] sm:$0xf]
      %v408 = vld [vmem:[%s209 + $0x2cc] sm:$0xf]
      %v409 = vld [vmem:[%s209 + $0x2d0] sm:$0xf]
      %v410 = vld [vmem:[%s209 + $0x2d4] sm:$0xf]
      %v411 = vld [vmem:[%s209 + $0x2d8] sm:$0xf]
      %v412 = vld [vmem:[%s209 + $0x2dc] sm:$0xf]
      %v413 = vld [vmem:[%s209 + $0x2e0] sm:$0xf]
      %v414 = vld [vmem:[%s209 + $0x2e4] sm:$0xf]
      %v415 = vld [vmem:[%s209 + $0x2e8] sm:$0xf]
      %v416 = vld [vmem:[%s209 + $0x2ec] sm:$0xf]
      %v417 = vld [vmem:[%s209 + $0x2f0] sm:$0xf]
      %v418 = vld [vmem:[%s209 + $0x2f4] sm:$0xf]
      %v419 = vld [vmem:[%s209 + $0x2f8] sm:$0xf]
      %v420 = vld [vmem:[%s209 + $0x2fc] sm:$0xf]
      %v421 = vld [vmem:[%s209 + $0x300] sm:$0xf]
      %v422 = vld [vmem:[%s209 + $0x304] sm:$0xf]
      %v423 = vld [vmem:[%s209 + $0x308] sm:$0xf]
      %v424 = vld [vmem:[%s209 + $0x30c] sm:$0xf]
      %v425 = vld [vmem:[%s209 + $0x310] sm:$0xf]
      %v426 = vld [vmem:[%s209 + $0x314] sm:$0xf]
      %v427 = vld [vmem:[%s209 + $0x318] sm:$0xf]
      %v428 = vld [vmem:[%s209 + $0x31c] sm:$0xf]
      %v429 = vld [vmem:[%s209 + $0x320] sm:$0xf]
      %v430 = vld [vmem:[%s209 + $0x324] sm:$0xf]
      %v431 = vld [vmem:[%s209 + $0x328] sm:$0xf]
      %v432 = vld [vmem:[%s209 + $0x32c] sm:$0xf]
      %v433 = vld [vmem:[%s209 + $0x330] sm:$0xf]
      %v434 = vld [vmem:[%s209 + $0x334] sm:$0xf]
      %v435 = vld [vmem:[%s209 + $0x338] sm:$0xf]
      %v436 = vld [vmem:[%s209 + $0x33c] sm:$0xf]
      %v437 = vld [vmem:[%s209 + $0x340] sm:$0xf]
      %v438 = vld [vmem:[%s209 + $0x344] sm:$0xf]
      %v439 = vld [vmem:[%s209 + $0x348] sm:$0xf]
      %v440 = vld [vmem:[%s209 + $0x34c] sm:$0xf]
      %v441 = vld [vmem:[%s209 + $0x350] sm:$0xf]
      %v442 = vld [vmem:[%s209 + $0x354] sm:$0xf]
      %v443 = vld [vmem:[%s209 + $0x358] sm:$0xf]
      %v444 = vld [vmem:[%s209 + $0x35c] sm:$0xf]
      %v445 = vld [vmem:[%s209 + $0x360] sm:$0xf]
      %v446 = vld [vmem:[%s209 + $0x364] sm:$0xf]
      %v447 = vld [vmem:[%s209 + $0x368] sm:$0xf]
      %v448 = vld [vmem:[%s209 + $0x36c] sm:$0xf]
      %v449 = vld [vmem:[%s209 + $0x370] sm:$0xf]
      %v450 = vld [vmem:[%s209 + $0x374] sm:$0xf]
      %v451 = vld [vmem:[%s209 + $0x378] sm:$0xf]
      %v452 = vld [vmem:[%s209 + $0x37c] sm:$0xf]
      %v453 = vld [vmem:[%s209 + $0x380] sm:$0xf]
      %v454 = vld [vmem:[%s209 + $0x384] sm:$0xf]
      %v455 = vld [vmem:[%s209 + $0x388] sm:$0xf]
      %v456 = vld [vmem:[%s209 + $0x38c] sm:$0xf]
      %v457 = vld [vmem:[%s209 + $0x390] sm:$0xf]
      %v458 = vld [vmem:[%s209 + $0x394] sm:$0xf]
      %v459 = vld [vmem:[%s209 + $0x398] sm:$0xf]
      %v460 = vld [vmem:[%s209 + $0x39c] sm:$0xf]
      %v461 = vld [vmem:[%s209 + $0x3a0] sm:$0xf]
      %v462 = vld [vmem:[%s209 + $0x3a4] sm:$0xf]
      %v463 = vld [vmem:[%s209 + $0x3a8] sm:$0xf]
      %v464 = vld [vmem:[%s209 + $0x3ac] sm:$0xf]
      %v465 = vld [vmem:[%s209 + $0x3b0] sm:$0xf]
      %v466 = vld [vmem:[%s209 + $0x3b4] sm:$0xf]
      %v467 = vld [vmem:[%s209 + $0x3b8] sm:$0xf]
      %v468 = vld [vmem:[%s209 + $0x3bc] sm:$0xf]
      %v469 = vld [vmem:[%s209 + $0x3c0] sm:$0xf]
      %v470 = vld [vmem:[%s209 + $0x3c4] sm:$0xf]
      %v471 = vld [vmem:[%s209 + $0x3c8] sm:$0xf]
      %v472 = vld [vmem:[%s209 + $0x3cc] sm:$0xf]
      %v473 = vld [vmem:[%s209 + $0x3d0] sm:$0xf]
      %v474 = vld [vmem:[%s209 + $0x3d4] sm:$0xf]
      %v475 = vld [vmem:[%s209 + $0x3d8] sm:$0xf]
      %v476 = vld [vmem:[%s209 + $0x3dc] sm:$0xf]
      %v477 = vld [vmem:[%s209 + $0x3e0] sm:$0xf]
      %v478 = vld [vmem:[%s209 + $0x3e4] sm:$0xf]
      %v479 = vld [vmem:[%s209 + $0x3e8] sm:$0xf]
      %v480 = vld [vmem:[%s209 + $0x3ec] sm:$0xf]
      %v481 = vld [vmem:[%s209 + $0x3f0] sm:$0xf]
      %v482 = vld [vmem:[%s209 + $0x3f4] sm:$0xf]
      %v483 = vld [vmem:[%s209 + $0x3f8] sm:$0xf]
      %v484 = vld [vmem:[%s209 + $0x3fc] sm:$0xf]
      %v485 = vld [vmem:[%s212] sm:$0x1]
      %v487 = vlaneseq
      %v488 = vshrl.u32 %v487, 7
      %v489 = vsub.s32 0, %v488
      %v490 = vrot.slane %v485, %v489
      %v500 = vunpack.c.l.b16 %v221
      %v501 = vunpack.c.h.b16 %v221
      %v502 = vunpack.c.l.b16 %v222
      %v503 = vunpack.c.h.b16 %v222
      %v504 = vunpack.c.l.b16 %v223
      %v505 = vunpack.c.h.b16 %v223
      %v506 = vunpack.c.l.b16 %v224
      %v507 = vunpack.c.h.b16 %v224
      %v508 = vunpack.c.l.b16 %v225
      %v509 = vunpack.c.h.b16 %v225
      %v510 = vunpack.c.l.b16 %v226
      %v511 = vunpack.c.h.b16 %v226
      %v512 = vunpack.c.l.b16 %v227
      %v513 = vunpack.c.h.b16 %v227
      %v514 = vunpack.c.l.b16 %v228
      %v515 = vunpack.c.h.b16 %v228
      %v516 = vpack.c.b16 %v500, %v500
      %v517 = vpack.c.b16 %v501, %v501
      %v518 = vpack.c.b16 %v502, %v502
      %v519 = vpack.c.b16 %v503, %v503
      %v520 = vpack.c.b16 %v504, %v504
      %v521 = vpack.c.b16 %v505, %v505
      %v522 = vpack.c.b16 %v506, %v506
      %v523 = vpack.c.b16 %v507, %v507
      %v524 = vpack.c.b16 %v508, %v508
      %v525 = vpack.c.b16 %v509, %v509
      %v526 = vpack.c.b16 %v510, %v510
      %v527 = vpack.c.b16 %v511, %v511
      %v528 = vpack.c.b16 %v512, %v512
      %v529 = vpack.c.b16 %v513, %v513
      %v530 = vpack.c.b16 %v514, %v514
      %v531 = vpack.c.b16 %v515, %v515
      %v804 = vunpack.c.l.b16 %v229
      %v805 = vunpack.c.l.b16 %v230
      %v806 = vunpack.c.l.b16 %v231
      %v807 = vunpack.c.l.b16 %v232
      %v808 = vunpack.c.l.b16 %v233
      %v809 = vunpack.c.l.b16 %v234
      %v810 = vunpack.c.l.b16 %v235
      %v811 = vunpack.c.l.b16 %v236
      %v812 = vunpack.c.l.b16 %v237
      %v813 = vunpack.c.l.b16 %v238
      %v814 = vunpack.c.l.b16 %v239
      %v815 = vunpack.c.l.b16 %v240
      %v816 = vunpack.c.l.b16 %v241
      %v817 = vunpack.c.l.b16 %v242
      %v818 = vunpack.c.l.b16 %v243
      %v819 = vunpack.c.l.b16 %v244
      %v820 = vunpack.c.l.b16 %v245
      %v821 = vunpack.c.l.b16 %v246
      %v822 = vunpack.c.l.b16 %v247
      %v823 = vunpack.c.l.b16 %v248
      %v824 = vunpack.c.l.b16 %v249
      %v825 = vunpack.c.l.b16 %v250
      %v826 = vunpack.c.l.b16 %v251
      %v827 = vunpack.c.l.b16 %v252
      %v828 = vunpack.c.l.b16 %v253
      %v829 = vunpack.c.l.b16 %v254
      %v830 = vunpack.c.l.b16 %v255
      %v831 = vunpack.c.l.b16 %v256
      %v832 = vunpack.c.l.b16 %v257
      %v833 = vunpack.c.l.b16 %v258
      %v834 = vunpack.c.l.b16 %v259
      %v835 = vunpack.c.l.b16 %v260
      %v836 = vunpack.c.l.b16 %v261
      %v837 = vunpack.c.l.b16 %v262
      %v838 = vunpack.c.l.b16 %v263
      %v839 = vunpack.c.l.b16 %v264
      %v840 = vunpack.c.l.b16 %v265
      %v841 = vunpack.c.l.b16 %v266
      %v842 = vunpack.c.l.b16 %v267
      %v843 = vunpack.c.l.b16 %v268
      %v844 = vunpack.c.l.b16 %v269
      %v845 = vunpack.c.l.b16 %v270
      %v846 = vunpack.c.l.b16 %v271
      %v847 = vunpack.c.l.b16 %v272
      %v848 = vunpack.c.l.b16 %v273
      %v849 = vunpack.c.l.b16 %v274
      %v850 = vunpack.c.l.b16 %v275
      %v851 = vunpack.c.l.b16 %v276
      %v852 = vunpack.c.l.b16 %v277
      %v853 = vunpack.c.l.b16 %v278
      %v854 = vunpack.c.l.b16 %v279
      %v855 = vunpack.c.l.b16 %v280
      %v856 = vunpack.c.l.b16 %v281
      %v857 = vunpack.c.l.b16 %v282
      %v858 = vunpack.c.l.b16 %v283
      %v859 = vunpack.c.l.b16 %v284
      %v860 = vunpack.c.l.b16 %v285
      %v861 = vunpack.c.l.b16 %v286
      %v862 = vunpack.c.l.b16 %v287
      %v863 = vunpack.c.l.b16 %v288
      %v864 = vunpack.c.l.b16 %v289
      %v865 = vunpack.c.l.b16 %v290
      %v866 = vunpack.c.l.b16 %v291
      %v867 = vunpack.c.l.b16 %v292
      %v868 = vunpack.c.l.b16 %v293
      %v869 = vunpack.c.l.b16 %v294
      %v870 = vunpack.c.l.b16 %v295
      %v871 = vunpack.c.l.b16 %v296
      %v872 = vunpack.c.l.b16 %v297
      %v873 = vunpack.c.l.b16 %v298
      %v874 = vunpack.c.l.b16 %v299
      %v875 = vunpack.c.l.b16 %v300
      %v876 = vunpack.c.l.b16 %v301
      %v877 = vunpack.c.l.b16 %v302
      %v878 = vunpack.c.l.b16 %v303
      %v879 = vunpack.c.l.b16 %v304
      %v880 = vunpack.c.l.b16 %v305
      %v881 = vunpack.c.l.b16 %v306
      %v882 = vunpack.c.l.b16 %v307
      %v883 = vunpack.c.l.b16 %v308
      %v884 = vunpack.c.l.b16 %v309
      %v885 = vunpack.c.l.b16 %v310
      %v886 = vunpack.c.l.b16 %v311
      %v887 = vunpack.c.l.b16 %v312
      %v888 = vunpack.c.l.b16 %v313
      %v889 = vunpack.c.l.b16 %v314
      %v890 = vunpack.c.l.b16 %v315
      %v891 = vunpack.c.l.b16 %v316
      %v892 = vunpack.c.l.b16 %v317
      %v893 = vunpack.c.l.b16 %v318
      %v894 = vunpack.c.l.b16 %v319
      %v895 = vunpack.c.l.b16 %v320
      %v896 = vunpack.c.l.b16 %v321
      %v897 = vunpack.c.l.b16 %v322
      %v898 = vunpack.c.l.b16 %v323
      %v899 = vunpack.c.l.b16 %v324
      %v900 = vunpack.c.l.b16 %v325
      %v901 = vunpack.c.l.b16 %v326
      %v902 = vunpack.c.l.b16 %v327
      %v903 = vunpack.c.l.b16 %v328
      %v904 = vunpack.c.l.b16 %v329
      %v905 = vunpack.c.l.b16 %v330
      %v906 = vunpack.c.l.b16 %v331
      %v907 = vunpack.c.l.b16 %v332
      %v908 = vunpack.c.l.b16 %v333
      %v909 = vunpack.c.l.b16 %v334
      %v910 = vunpack.c.l.b16 %v335
      %v911 = vunpack.c.l.b16 %v336
      %v912 = vunpack.c.l.b16 %v337
      %v913 = vunpack.c.l.b16 %v338
      %v914 = vunpack.c.l.b16 %v339
      %v915 = vunpack.c.l.b16 %v340
      %v916 = vunpack.c.l.b16 %v341
      %v917 = vunpack.c.l.b16 %v342
      %v918 = vunpack.c.l.b16 %v343
      %v919 = vunpack.c.l.b16 %v344
      %v920 = vunpack.c.l.b16 %v345
      %v921 = vunpack.c.l.b16 %v346
      %v922 = vunpack.c.l.b16 %v347
      %v923 = vunpack.c.l.b16 %v348
      %v924 = vunpack.c.l.b16 %v349
      %v925 = vunpack.c.l.b16 %v350
      %v926 = vunpack.c.l.b16 %v351
      %v927 = vunpack.c.l.b16 %v352
      %v928 = vunpack.c.l.b16 %v353
      %v929 = vunpack.c.l.b16 %v354
      %v930 = vunpack.c.l.b16 %v355
      %v931 = vunpack.c.l.b16 %v356
      %v932 = vunpack.c.l.b16 %v357
      %v933 = vunpack.c.l.b16 %v358
      %v934 = vunpack.c.l.b16 %v359
      %v935 = vunpack.c.l.b16 %v360
      %v936 = vunpack.c.l.b16 %v361
      %v937 = vunpack.c.l.b16 %v362
      %v938 = vunpack.c.l.b16 %v363
      %v939 = vunpack.c.l.b16 %v364
      %v940 = vunpack.c.l.b16 %v365
      %v941 = vunpack.c.l.b16 %v366
      %v942 = vunpack.c.l.b16 %v367
      %v943 = vunpack.c.l.b16 %v368
      %v944 = vunpack.c.l.b16 %v369
      %v945 = vunpack.c.l.b16 %v370
      %v946 = vunpack.c.l.b16 %v371
      %v947 = vunpack.c.l.b16 %v372
      %v948 = vunpack.c.l.b16 %v373
      %v949 = vunpack.c.l.b16 %v374
      %v950 = vunpack.c.l.b16 %v375
      %v951 = vunpack.c.l.b16 %v376
      %v952 = vunpack.c.l.b16 %v377
      %v953 = vunpack.c.l.b16 %v378
      %v954 = vunpack.c.l.b16 %v379
      %v955 = vunpack.c.l.b16 %v380
      %v956 = vunpack.c.l.b16 %v381
      %v957 = vunpack.c.l.b16 %v382
      %v958 = vunpack.c.l.b16 %v383
      %v959 = vunpack.c.l.b16 %v384
      %v960 = vunpack.c.l.b16 %v385
      %v961 = vunpack.c.l.b16 %v386
      %v962 = vunpack.c.l.b16 %v387
      %v963 = vunpack.c.l.b16 %v388
      %v964 = vunpack.c.l.b16 %v389
      %v965 = vunpack.c.l.b16 %v390
      %v966 = vunpack.c.l.b16 %v391
      %v967 = vunpack.c.l.b16 %v392
      %v968 = vunpack.c.l.b16 %v393
      %v969 = vunpack.c.l.b16 %v394
      %v970 = vunpack.c.l.b16 %v395
      %v971 = vunpack.c.l.b16 %v396
      %v972 = vunpack.c.l.b16 %v397
      %v973 = vunpack.c.l.b16 %v398
      %v974 = vunpack.c.l.b16 %v399
      %v975 = vunpack.c.l.b16 %v400
      %v976 = vunpack.c.l.b16 %v401
      %v977 = vunpack.c.l.b16 %v402
      %v978 = vunpack.c.l.b16 %v403
      %v979 = vunpack.c.l.b16 %v404
      %v980 = vunpack.c.l.b16 %v405
      %v981 = vunpack.c.l.b16 %v406
      %v982 = vunpack.c.l.b16 %v407
      %v983 = vunpack.c.l.b16 %v408
      %v984 = vunpack.c.l.b16 %v409
      %v985 = vunpack.c.l.b16 %v410
      %v986 = vunpack.c.l.b16 %v411
      %v987 = vunpack.c.l.b16 %v412
      %v988 = vunpack.c.l.b16 %v413
      %v989 = vunpack.c.l.b16 %v414
      %v990 = vunpack.c.l.b16 %v415
      %v991 = vunpack.c.l.b16 %v416
      %v992 = vunpack.c.l.b16 %v417
      %v993 = vunpack.c.l.b16 %v418
      %v994 = vunpack.c.l.b16 %v419
      %v995 = vunpack.c.l.b16 %v420
      %v996 = vunpack.c.l.b16 %v421
      %v997 = vunpack.c.l.b16 %v422
      %v998 = vunpack.c.l.b16 %v423
      %v999 = vunpack.c.l.b16 %v424
      %v1000 = vunpack.c.l.b16 %v425
      %v1001 = vunpack.c.l.b16 %v426
      %v1002 = vunpack.c.l.b16 %v427
      %v1003 = vunpack.c.l.b16 %v428
      %v1004 = vunpack.c.l.b16 %v429
      %v1005 = vunpack.c.l.b16 %v430
      %v1006 = vunpack.c.l.b16 %v431
      %v1007 = vunpack.c.l.b16 %v432
      %v1008 = vunpack.c.l.b16 %v433
      %v1009 = vunpack.c.l.b16 %v434
      %v1010 = vunpack.c.l.b16 %v435
      %v1011 = vunpack.c.l.b16 %v436
      %v1012 = vunpack.c.l.b16 %v437
      %v1013 = vunpack.c.l.b16 %v438
      %v1014 = vunpack.c.l.b16 %v439
      %v1015 = vunpack.c.l.b16 %v440
      %v1016 = vunpack.c.l.b16 %v441
      %v1017 = vunpack.c.l.b16 %v442
      %v1018 = vunpack.c.l.b16 %v443
      %v1019 = vunpack.c.l.b16 %v444
      %v1020 = vunpack.c.l.b16 %v445
      %v1021 = vunpack.c.l.b16 %v446
      %v1022 = vunpack.c.l.b16 %v447
      %v1023 = vunpack.c.l.b16 %v448
      %v1024 = vunpack.c.l.b16 %v449
      %v1025 = vunpack.c.l.b16 %v450
      %v1026 = vunpack.c.l.b16 %v451
      %v1027 = vunpack.c.l.b16 %v452
      %v1028 = vunpack.c.l.b16 %v453
      %v1029 = vunpack.c.l.b16 %v454
      %v1030 = vunpack.c.l.b16 %v455
      %v1031 = vunpack.c.l.b16 %v456
      %v1032 = vunpack.c.l.b16 %v457
      %v1033 = vunpack.c.l.b16 %v458
      %v1034 = vunpack.c.l.b16 %v459
      %v1035 = vunpack.c.l.b16 %v460
      %v1036 = vunpack.c.l.b16 %v461
      %v1037 = vunpack.c.l.b16 %v462
      %v1038 = vunpack.c.l.b16 %v463
      %v1039 = vunpack.c.l.b16 %v464
      %v1040 = vunpack.c.l.b16 %v465
      %v1041 = vunpack.c.l.b16 %v466
      %v1042 = vunpack.c.l.b16 %v467
      %v1043 = vunpack.c.l.b16 %v468
      %v1044 = vunpack.c.l.b16 %v469
      %v1045 = vunpack.c.l.b16 %v470
      %v1046 = vunpack.c.l.b16 %v471
      %v1047 = vunpack.c.l.b16 %v472
      %v1048 = vunpack.c.l.b16 %v473
      %v1049 = vunpack.c.l.b16 %v474
      %v1050 = vunpack.c.l.b16 %v475
      %v1051 = vunpack.c.l.b16 %v476
      %v1052 = vunpack.c.l.b16 %v477
      %v1053 = vunpack.c.l.b16 %v478
      %v1054 = vunpack.c.l.b16 %v479
      %v1055 = vunpack.c.l.b16 %v480
      %v1056 = vunpack.c.l.b16 %v481
      %v1057 = vunpack.c.l.b16 %v482
      %v1058 = vunpack.c.l.b16 %v483
      %v1059 = vunpack.c.l.b16 %v484
      %v1060 = vpack.c.b16 %v805, %v804
      %v1061 = vpack.c.b16 %v807, %v806
      %v1062 = vpack.c.b16 %v809, %v808
      %v1063 = vpack.c.b16 %v811, %v810
      %v1064 = vpack.c.b16 %v813, %v812
      %v1065 = vpack.c.b16 %v815, %v814
      %v1066 = vpack.c.b16 %v817, %v816
      %v1067 = vpack.c.b16 %v819, %v818
      %v1068 = vpack.c.b16 %v821, %v820
      %v1069 = vpack.c.b16 %v823, %v822
      %v1070 = vpack.c.b16 %v825, %v824
      %v1071 = vpack.c.b16 %v827, %v826
      %v1072 = vpack.c.b16 %v829, %v828
      %v1073 = vpack.c.b16 %v831, %v830
      %v1074 = vpack.c.b16 %v833, %v832
      %v1075 = vpack.c.b16 %v835, %v834
      %v1076 = vpack.c.b16 %v837, %v836
      %v1077 = vpack.c.b16 %v839, %v838
      %v1078 = vpack.c.b16 %v841, %v840
      %v1079 = vpack.c.b16 %v843, %v842
      %v1080 = vpack.c.b16 %v845, %v844
      %v1081 = vpack.c.b16 %v847, %v846
      %v1082 = vpack.c.b16 %v849, %v848
      %v1083 = vpack.c.b16 %v851, %v850
      %v1084 = vpack.c.b16 %v853, %v852
      %v1085 = vpack.c.b16 %v855, %v854
      %v1086 = vpack.c.b16 %v857, %v856
      %v1087 = vpack.c.b16 %v859, %v858
      %v1088 = vpack.c.b16 %v861, %v860
      %v1089 = vpack.c.b16 %v863, %v862
      %v1090 = vpack.c.b16 %v865, %v864
      %v1091 = vpack.c.b16 %v867, %v866
      %v1092 = vpack.c.b16 %v869, %v868
      %v1093 = vpack.c.b16 %v871, %v870
      %v1094 = vpack.c.b16 %v873, %v872
      %v1095 = vpack.c.b16 %v875, %v874
      %v1096 = vpack.c.b16 %v877, %v876
      %v1097 = vpack.c.b16 %v879, %v878
      %v1098 = vpack.c.b16 %v881, %v880
      %v1099 = vpack.c.b16 %v883, %v882
      %v1100 = vpack.c.b16 %v885, %v884
      %v1101 = vpack.c.b16 %v887, %v886
      %v1102 = vpack.c.b16 %v889, %v888
      %v1103 = vpack.c.b16 %v891, %v890
      %v1104 = vpack.c.b16 %v893, %v892
      %v1105 = vpack.c.b16 %v895, %v894
      %v1106 = vpack.c.b16 %v897, %v896
      %v1107 = vpack.c.b16 %v899, %v898
      %v1108 = vpack.c.b16 %v901, %v900
      %v1109 = vpack.c.b16 %v903, %v902
      %v1110 = vpack.c.b16 %v905, %v904
      %v1111 = vpack.c.b16 %v907, %v906
      %v1112 = vpack.c.b16 %v909, %v908
      %v1113 = vpack.c.b16 %v911, %v910
      %v1114 = vpack.c.b16 %v913, %v912
      %v1115 = vpack.c.b16 %v915, %v914
      %v1116 = vpack.c.b16 %v917, %v916
      %v1117 = vpack.c.b16 %v919, %v918
      %v1118 = vpack.c.b16 %v921, %v920
      %v1119 = vpack.c.b16 %v923, %v922
      %v1120 = vpack.c.b16 %v925, %v924
      %v1121 = vpack.c.b16 %v927, %v926
      %v1122 = vpack.c.b16 %v929, %v928
      %v1123 = vpack.c.b16 %v931, %v930
      %v1124 = vpack.c.b16 %v933, %v932
      %v1125 = vpack.c.b16 %v935, %v934
      %v1126 = vpack.c.b16 %v937, %v936
      %v1127 = vpack.c.b16 %v939, %v938
      %v1128 = vpack.c.b16 %v941, %v940
      %v1129 = vpack.c.b16 %v943, %v942
      %v1130 = vpack.c.b16 %v945, %v944
      %v1131 = vpack.c.b16 %v947, %v946
      %v1132 = vpack.c.b16 %v949, %v948
      %v1133 = vpack.c.b16 %v951, %v950
      %v1134 = vpack.c.b16 %v953, %v952
      %v1135 = vpack.c.b16 %v955, %v954
      %v1136 = vpack.c.b16 %v957, %v956
      %v1137 = vpack.c.b16 %v959, %v958
      %v1138 = vpack.c.b16 %v961, %v960
      %v1139 = vpack.c.b16 %v963, %v962
      %v1140 = vpack.c.b16 %v965, %v964
      %v1141 = vpack.c.b16 %v967, %v966
      %v1142 = vpack.c.b16 %v969, %v968
      %v1143 = vpack.c.b16 %v971, %v970
      %v1144 = vpack.c.b16 %v973, %v972
      %v1145 = vpack.c.b16 %v975, %v974
      %v1146 = vpack.c.b16 %v977, %v976
      %v1147 = vpack.c.b16 %v979, %v978
      %v1148 = vpack.c.b16 %v981, %v980
      %v1149 = vpack.c.b16 %v983, %v982
      %v1150 = vpack.c.b16 %v985, %v984
      %v1151 = vpack.c.b16 %v987, %v986
      %v1152 = vpack.c.b16 %v989, %v988
      %v1153 = vpack.c.b16 %v991, %v990
      %v1154 = vpack.c.b16 %v993, %v992
      %v1155 = vpack.c.b16 %v995, %v994
      %v1156 = vpack.c.b16 %v997, %v996
      %v1157 = vpack.c.b16 %v999, %v998
      %v1158 = vpack.c.b16 %v1001, %v1000
      %v1159 = vpack.c.b16 %v1003, %v1002
      %v1160 = vpack.c.b16 %v1005, %v1004
      %v1161 = vpack.c.b16 %v1007, %v1006
      %v1162 = vpack.c.b16 %v1009, %v1008
      %v1163 = vpack.c.b16 %v1011, %v1010
      %v1164 = vpack.c.b16 %v1013, %v1012
      %v1165 = vpack.c.b16 %v1015, %v1014
      %v1166 = vpack.c.b16 %v1017, %v1016
      %v1167 = vpack.c.b16 %v1019, %v1018
      %v1168 = vpack.c.b16 %v1021, %v1020
      %v1169 = vpack.c.b16 %v1023, %v1022
      %v1170 = vpack.c.b16 %v1025, %v1024
      %v1171 = vpack.c.b16 %v1027, %v1026
      %v1172 = vpack.c.b16 %v1029, %v1028
      %v1173 = vpack.c.b16 %v1031, %v1030
      %v1174 = vpack.c.b16 %v1033, %v1032
      %v1175 = vpack.c.b16 %v1035, %v1034
      %v1176 = vpack.c.b16 %v1037, %v1036
      %v1177 = vpack.c.b16 %v1039, %v1038
      %v1178 = vpack.c.b16 %v1041, %v1040
      %v1179 = vpack.c.b16 %v1043, %v1042
      %v1180 = vpack.c.b16 %v1045, %v1044
      %v1181 = vpack.c.b16 %v1047, %v1046
      %v1182 = vpack.c.b16 %v1049, %v1048
      %v1183 = vpack.c.b16 %v1051, %v1050
      %v1184 = vpack.c.b16 %v1053, %v1052
      %v1185 = vpack.c.b16 %v1055, %v1054
      %v1186 = vpack.c.b16 %v1057, %v1056
      %v1187 = vpack.c.b16 %v1059, %v1058
      %1316 = vmatprep.subr.bf16.mxu0 0
      %1317 = vmatpush1.bf16.msra.mxu0 %v1060
      %1318 = vmatprep.subr.bf16.mxu0 0
      %1319 = vmatpush1.bf16.msra.mxu0 %v1061
      %1320 = vmatprep.subr.bf16.mxu0 0
      %1321 = vmatpush1.bf16.msra.mxu0 %v1062
      %1322 = vmatprep.subr.bf16.mxu0 0
      %1323 = vmatpush1.bf16.msra.mxu0 %v1063
      %1324 = vmatprep.subr.bf16.mxu0 0
      %1325 = vmatpush1.bf16.msra.mxu0 %v1064
      %1326 = vmatprep.subr.bf16.mxu0 0
      %1327 = vmatpush1.bf16.msra.mxu0 %v1065
      %1328 = vmatprep.subr.bf16.mxu0 0
      %1329 = vmatpush1.bf16.msra.mxu0 %v1066
      %1330 = vmatprep.subr.bf16.mxu0 0
      %1331 = vmatpush1.bf16.msra.mxu0 %v1067
      %1332 = vmatprep.subr.bf16.mxu0 0
      %1333 = vmatpush1.bf16.msra.mxu0 %v1068
      %1334 = vmatprep.subr.bf16.mxu0 0
      %1335 = vmatpush1.bf16.msra.mxu0 %v1069
      %1336 = vmatprep.subr.bf16.mxu0 0
      %1337 = vmatpush1.bf16.msra.mxu0 %v1070
      %1338 = vmatprep.subr.bf16.mxu0 0
      %1339 = vmatpush1.bf16.msra.mxu0 %v1071
      %1340 = vmatprep.subr.bf16.mxu0 0
      %1341 = vmatpush1.bf16.msra.mxu0 %v1072
      %1342 = vmatprep.subr.bf16.mxu0 0
      %1343 = vmatpush1.bf16.msra.mxu0 %v1073
      %1344 = vmatprep.subr.bf16.mxu0 0
      %1345 = vmatpush1.bf16.msra.mxu0 %v1074
      %1346 = vmatprep.subr.bf16.mxu0 0
      %1347 = vmatpush1.bf16.msra.mxu0 %v1075
      %1348 = vmatprep.mubr.bf16.mxu0 %v517
      %1349 = vmatmul.mubr.bf16.gmra.mrb[0].mxu0 %v516
      %v1350 = vpop.f32.mrb[0].mxu0
      %v1351 = vadd.f32 %v490, %v1350
      %v1352 = vpop.f32.mrb[0].mxu0
      %v1353 = vpop.f32.mrb[0].mxu0
      %v1354 = vpop.f32.mrb[0].mxu0
      %1355 = vdwg.mxu0
      %1356 = vmatprep.subr.bf16.mxu0 0
      %1357 = vmatpush1.bf16.msra.mxu0 %v1076
      %1358 = vmatprep.subr.bf16.mxu0 0
      %1359 = vmatpush1.bf16.msra.mxu0 %v1077
      %1360 = vmatprep.subr.bf16.mxu0 0
      %1361 = vmatpush1.bf16.msra.mxu0 %v1078
      %1362 = vmatprep.subr.bf16.mxu0 0
      %1363 = vmatpush1.bf16.msra.mxu0 %v1079
      %1364 = vmatprep.subr.bf16.mxu0 0
      %1365 = vmatpush1.bf16.msra.mxu0 %v1080
      %1366 = vmatprep.subr.bf16.mxu0 0
      %1367 = vmatpush1.bf16.msra.mxu0 %v1081
      %1368 = vmatprep.subr.bf16.mxu0 0
      %1369 = vmatpush1.bf16.msra.mxu0 %v1082
      %1370 = vmatprep.subr.bf16.mxu0 0
      %1371 = vmatpush1.bf16.msra.mxu0 %v1083
      %1372 = vmatprep.subr.bf16.mxu0 0
      %1373 = vmatpush1.bf16.msra.mxu0 %v1084
      %1374 = vmatprep.subr.bf16.mxu0 0
      %1375 = vmatpush1.bf16.msra.mxu0 %v1085
      %1376 = vmatprep.subr.bf16.mxu0 0
      %1377 = vmatpush1.bf16.msra.mxu0 %v1086
      %1378 = vmatprep.subr.bf16.mxu0 0
      %1379 = vmatpush1.bf16.msra.mxu0 %v1087
      %1380 = vmatprep.subr.bf16.mxu0 0
      %1381 = vmatpush1.bf16.msra.mxu0 %v1088
      %1382 = vmatprep.subr.bf16.mxu0 0
      %1383 = vmatpush1.bf16.msra.mxu0 %v1089
      %1384 = vmatprep.subr.bf16.mxu0 0
      %1385 = vmatpush1.bf16.msra.mxu0 %v1090
      %1386 = vmatprep.subr.bf16.mxu0 0
      %1387 = vmatpush1.bf16.msra.mxu0 %v1091
      %1388 = vmatprep.mubr.bf16.mxu0 %v519
      %1389 = vmatmul.mubr.bf16.gmra.mrb[0].mxu0 %v518
      %v1390 = vpop.f32.mrb[0].mxu0
      %v1391 = vadd.f32 %v1351, %v1390
      %v1392 = vpop.f32.mrb[0].mxu0
      %v1393 = vpop.f32.mrb[0].mxu0
      %v1394 = vpop.f32.mrb[0].mxu0
      %1395 = vdwg.mxu0
      %1396 = vmatprep.subr.bf16.mxu0 0
      %1397 = vmatpush1.bf16.msra.mxu0 %v1092
      %1398 = vmatprep.subr.bf16.mxu0 0
      %1399 = vmatpush1.bf16.msra.mxu0 %v1093
      %1400 = vmatprep.subr.bf16.mxu0 0
      %1401 = vmatpush1.bf16.msra.mxu0 %v1094
      %1402 = vmatprep.subr.bf16.mxu0 0
      %1403 = vmatpush1.bf16.msra.mxu0 %v1095
      %1404 = vmatprep.subr.bf16.mxu0 0
      %1405 = vmatpush1.bf16.msra.mxu0 %v1096
      %1406 = vmatprep.subr.bf16.mxu0 0
      %1407 = vmatpush1.bf16.msra.mxu0 %v1097
      %1408 = vmatprep.subr.bf16.mxu0 0
      %1409 = vmatpush1.bf16.msra.mxu0 %v1098
      %1410 = vmatprep.subr.bf16.mxu0 0
      %1411 = vmatpush1.bf16.msra.mxu0 %v1099
      %1412 = vmatprep.subr.bf16.mxu0 0
      %1413 = vmatpush1.bf16.msra.mxu0 %v1100
      %1414 = vmatprep.subr.bf16.mxu0 0
      %1415 = vmatpush1.bf16.msra.mxu0 %v1101
      %1416 = vmatprep.subr.bf16.mxu0 0
      %1417 = vmatpush1.bf16.msra.mxu0 %v1102
      %1418 = vmatprep.subr.bf16.mxu0 0
      %1419 = vmatpush1.bf16.msra.mxu0 %v1103
      %1420 = vmatprep.subr.bf16.mxu0 0
      %1421 = vmatpush1.bf16.msra.mxu0 %v1104
      %1422 = vmatprep.subr.bf16.mxu0 0
      %1423 = vmatpush1.bf16.msra.mxu0 %v1105
      %1424 = vmatprep.subr.bf16.mxu0 0
      %1425 = vmatpush1.bf16.msra.mxu0 %v1106
      %1426 = vmatprep.subr.bf16.mxu0 0
      %1427 = vmatpush1.bf16.msra.mxu0 %v1107
      %1428 = vmatprep.mubr.bf16.mxu0 %v521
      %1429 = vmatmul.mubr.bf16.gmra.mrb[0].mxu0 %v520
      %v1430 = vpop.f32.mrb[0].mxu0
      %v1431 = vadd.f32 %v1391, %v1430
      %v1432 = vpop.f32.mrb[0].mxu0
      %v1433 = vpop.f32.mrb[0].mxu0
      %v1434 = vpop.f32.mrb[0].mxu0
      %1435 = vdwg.mxu0
      %1436 = vmatprep.subr.bf16.mxu0 0
      %1437 = vmatpush1.bf16.msra.mxu0 %v1108
      %1438 = vmatprep.subr.bf16.mxu0 0
      %1439 = vmatpush1.bf16.msra.mxu0 %v1109
      %1440 = vmatprep.subr.bf16.mxu0 0
      %1441 = vmatpush1.bf16.msra.mxu0 %v1110
      %1442 = vmatprep.subr.bf16.mxu0 0
      %1443 = vmatpush1.bf16.msra.mxu0 %v1111
      %1444 = vmatprep.subr.bf16.mxu0 0
      %1445 = vmatpush1.bf16.msra.mxu0 %v1112
      %1446 = vmatprep.subr.bf16.mxu0 0
      %1447 = vmatpush1.bf16.msra.mxu0 %v1113
      %1448 = vmatprep.subr.bf16.mxu0 0
      %1449 = vmatpush1.bf16.msra.mxu0 %v1114
      %1450 = vmatprep.subr.bf16.mxu0 0
      %1451 = vmatpush1.bf16.msra.mxu0 %v1115
      %1452 = vmatprep.subr.bf16.mxu0 0
      %1453 = vmatpush1.bf16.msra.mxu0 %v1116
      %1454 = vmatprep.subr.bf16.mxu0 0
      %1455 = vmatpush1.bf16.msra.mxu0 %v1117
      %1456 = vmatprep.subr.bf16.mxu0 0
      %1457 = vmatpush1.bf16.msra.mxu0 %v1118
      %1458 = vmatprep.subr.bf16.mxu0 0
      %1459 = vmatpush1.bf16.msra.mxu0 %v1119
      %1460 = vmatprep.subr.bf16.mxu0 0
      %1461 = vmatpush1.bf16.msra.mxu0 %v1120
      %1462 = vmatprep.subr.bf16.mxu0 0
      %1463 = vmatpush1.bf16.msra.mxu0 %v1121
      %1464 = vmatprep.subr.bf16.mxu0 0
      %1465 = vmatpush1.bf16.msra.mxu0 %v1122
      %1466 = vmatprep.subr.bf16.mxu0 0
      %1467 = vmatpush1.bf16.msra.mxu0 %v1123
      %1468 = vmatprep.mubr.bf16.mxu0 %v523
      %1469 = vmatmul.mubr.bf16.gmra.mrb[0].mxu0 %v522
      %v1470 = vpop.f32.mrb[0].mxu0
      %v1471 = vadd.f32 %v1431, %v1470
      %v1472 = vpop.f32.mrb[0].mxu0
      %v1473 = vpop.f32.mrb[0].mxu0
      %v1474 = vpop.f32.mrb[0].mxu0
      %1475 = vdwg.mxu0
      %1476 = vmatprep.subr.bf16.mxu0 0
      %1477 = vmatpush1.bf16.msra.mxu0 %v1124
      %1478 = vmatprep.subr.bf16.mxu0 0
      %1479 = vmatpush1.bf16.msra.mxu0 %v1125
      %1480 = vmatprep.subr.bf16.mxu0 0
      %1481 = vmatpush1.bf16.msra.mxu0 %v1126
      %1482 = vmatprep.subr.bf16.mxu0 0
      %1483 = vmatpush1.bf16.msra.mxu0 %v1127
      %1484 = vmatprep.subr.bf16.mxu0 0
      %1485 = vmatpush1.bf16.msra.mxu0 %v1128
      %1486 = vmatprep.subr.bf16.mxu0 0
      %1487 = vmatpush1.bf16.msra.mxu0 %v1129
      %1488 = vmatprep.subr.bf16.mxu0 0
      %1489 = vmatpush1.bf16.msra.mxu0 %v1130
      %1490 = vmatprep.subr.bf16.mxu0 0
      %1491 = vmatpush1.bf16.msra.mxu0 %v1131
      %1492 = vmatprep.subr.bf16.mxu0 0
      %1493 = vmatpush1.bf16.msra.mxu0 %v1132
      %1494 = vmatprep.subr.bf16.mxu0 0
      %1495 = vmatpush1.bf16.msra.mxu0 %v1133
      %1496 = vmatprep.subr.bf16.mxu0 0
      %1497 = vmatpush1.bf16.msra.mxu0 %v1134
      %1498 = vmatprep.subr.bf16.mxu0 0
      %1499 = vmatpush1.bf16.msra.mxu0 %v1135
      %1500 = vmatprep.subr.bf16.mxu0 0
      %1501 = vmatpush1.bf16.msra.mxu0 %v1136
      %1502 = vmatprep.subr.bf16.mxu0 0
      %1503 = vmatpush1.bf16.msra.mxu0 %v1137
      %1504 = vmatprep.subr.bf16.mxu0 0
      %1505 = vmatpush1.bf16.msra.mxu0 %v1138
      %1506 = vmatprep.subr.bf16.mxu0 0
      %1507 = vmatpush1.bf16.msra.mxu0 %v1139
      %1508 = vmatprep.mubr.bf16.mxu0 %v525
      %1509 = vmatmul.mubr.bf16.gmra.mrb[0].mxu0 %v524
      %v1510 = vpop.f32.mrb[0].mxu0
      %v1511 = vadd.f32 %v1471, %v1510
      %v1512 = vpop.f32.mrb[0].mxu0
      %v1513 = vpop.f32.mrb[0].mxu0
      %v1514 = vpop.f32.mrb[0].mxu0
      %1515 = vdwg.mxu0
      %1516 = vmatprep.subr.bf16.mxu0 0
      %1517 = vmatpush1.bf16.msra.mxu0 %v1140
      %1518 = vmatprep.subr.bf16.mxu0 0
      %1519 = vmatpush1.bf16.msra.mxu0 %v1141
      %1520 = vmatprep.subr.bf16.mxu0 0
      %1521 = vmatpush1.bf16.msra.mxu0 %v1142
      %1522 = vmatprep.subr.bf16.mxu0 0
      %1523 = vmatpush1.bf16.msra.mxu0 %v1143
      %1524 = vmatprep.subr.bf16.mxu0 0
      %1525 = vmatpush1.bf16.msra.mxu0 %v1144
      %1526 = vmatprep.subr.bf16.mxu0 0
      %1527 = vmatpush1.bf16.msra.mxu0 %v1145
      %1528 = vmatprep.subr.bf16.mxu0 0
      %1529 = vmatpush1.bf16.msra.mxu0 %v1146
      %1530 = vmatprep.subr.bf16.mxu0 0
      %1531 = vmatpush1.bf16.msra.mxu0 %v1147
      %1532 = vmatprep.subr.bf16.mxu0 0
      %1533 = vmatpush1.bf16.msra.mxu0 %v1148
      %1534 = vmatprep.subr.bf16.mxu0 0
      %1535 = vmatpush1.bf16.msra.mxu0 %v1149
      %1536 = vmatprep.subr.bf16.mxu0 0
      %1537 = vmatpush1.bf16.msra.mxu0 %v1150
      %1538 = vmatprep.subr.bf16.mxu0 0
      %1539 = vmatpush1.bf16.msra.mxu0 %v1151
      %1540 = vmatprep.subr.bf16.mxu0 0
      %1541 = vmatpush1.bf16.msra.mxu0 %v1152
      %1542 = vmatprep.subr.bf16.mxu0 0
      %1543 = vmatpush1.bf16.msra.mxu0 %v1153
      %1544 = vmatprep.subr.bf16.mxu0 0
      %1545 = vmatpush1.bf16.msra.mxu0 %v1154
      %1546 = vmatprep.subr.bf16.mxu0 0
      %1547 = vmatpush1.bf16.msra.mxu0 %v1155
      %1548 = vmatprep.mubr.bf16.mxu0 %v527
      %1549 = vmatmul.mubr.bf16.gmra.mrb[0].mxu0 %v526
      %v1550 = vpop.f32.mrb[0].mxu0
      %v1551 = vadd.f32 %v1511, %v1550
      %v1552 = vpop.f32.mrb[0].mxu0
      %v1553 = vpop.f32.mrb[0].mxu0
      %v1554 = vpop.f32.mrb[0].mxu0
      %1555 = vdwg.mxu0
      %1556 = vmatprep.subr.bf16.mxu0 0
      %1557 = vmatpush1.bf16.msra.mxu0 %v1156
      %1558 = vmatprep.subr.bf16.mxu0 0
      %1559 = vmatpush1.bf16.msra.mxu0 %v1157
      %1560 = vmatprep.subr.bf16.mxu0 0
      %1561 = vmatpush1.bf16.msra.mxu0 %v1158
      %1562 = vmatprep.subr.bf16.mxu0 0
      %1563 = vmatpush1.bf16.msra.mxu0 %v1159
      %1564 = vmatprep.subr.bf16.mxu0 0
      %1565 = vmatpush1.bf16.msra.mxu0 %v1160
      %1566 = vmatprep.subr.bf16.mxu0 0
      %1567 = vmatpush1.bf16.msra.mxu0 %v1161
      %1568 = vmatprep.subr.bf16.mxu0 0
      %1569 = vmatpush1.bf16.msra.mxu0 %v1162
      %1570 = vmatprep.subr.bf16.mxu0 0
      %1571 = vmatpush1.bf16.msra.mxu0 %v1163
      %1572 = vmatprep.subr.bf16.mxu0 0
      %1573 = vmatpush1.bf16.msra.mxu0 %v1164
      %1574 = vmatprep.subr.bf16.mxu0 0
      %1575 = vmatpush1.bf16.msra.mxu0 %v1165
      %1576 = vmatprep.subr.bf16.mxu0 0
      %1577 = vmatpush1.bf16.msra.mxu0 %v1166
      %1578 = vmatprep.subr.bf16.mxu0 0
      %1579 = vmatpush1.bf16.msra.mxu0 %v1167
      %1580 = vmatprep.subr.bf16.mxu0 0
      %1581 = vmatpush1.bf16.msra.mxu0 %v1168
      %1582 = vmatprep.subr.bf16.mxu0 0
      %1583 = vmatpush1.bf16.msra.mxu0 %v1169
      %1584 = vmatprep.subr.bf16.mxu0 0
      %1585 = vmatpush1.bf16.msra.mxu0 %v1170
      %1586 = vmatprep.subr.bf16.mxu0 0
      %1587 = vmatpush1.bf16.msra.mxu0 %v1171
      %1588 = vmatprep.mubr.bf16.mxu0 %v529
      %1589 = vmatmul.mubr.bf16.gmra.mrb[0].mxu0 %v528
      %v1590 = vpop.f32.mrb[0].mxu0
      %v1591 = vadd.f32 %v1551, %v1590
      %v1592 = vpop.f32.mrb[0].mxu0
      %v1593 = vpop.f32.mrb[0].mxu0
      %v1594 = vpop.f32.mrb[0].mxu0
      %1595 = vdwg.mxu0
      %1596 = vmatprep.subr.bf16.mxu0 0
      %1597 = vmatpush1.bf16.msra.mxu0 %v1172
      %1598 = vmatprep.subr.bf16.mxu0 0
      %1599 = vmatpush1.bf16.msra.mxu0 %v1173
      %1600 = vmatprep.subr.bf16.mxu0 0
      %1601 = vmatpush1.bf16.msra.mxu0 %v1174
      %1602 = vmatprep.subr.bf16.mxu0 0
      %1603 = vmatpush1.bf16.msra.mxu0 %v1175
      %1604 = vmatprep.subr.bf16.mxu0 0
      %1605 = vmatpush1.bf16.msra.mxu0 %v1176
      %1606 = vmatprep.subr.bf16.mxu0 0
      %1607 = vmatpush1.bf16.msra.mxu0 %v1177
      %1608 = vmatprep.subr.bf16.mxu0 0
      %1609 = vmatpush1.bf16.msra.mxu0 %v1178
      %1610 = vmatprep.subr.bf16.mxu0 0
      %1611 = vmatpush1.bf16.msra.mxu0 %v1179
      %1612 = vmatprep.subr.bf16.mxu0 0
      %1613 = vmatpush1.bf16.msra.mxu0 %v1180
      %1614 = vmatprep.subr.bf16.mxu0 0
      %1615 = vmatpush1.bf16.msra.mxu0 %v1181
      %1616 = vmatprep.subr.bf16.mxu0 0
      %1617 = vmatpush1.bf16.msra.mxu0 %v1182
      %1618 = vmatprep.subr.bf16.mxu0 0
      %1619 = vmatpush1.bf16.msra.mxu0 %v1183
      %1620 = vmatprep.subr.bf16.mxu0 0
      %1621 = vmatpush1.bf16.msra.mxu0 %v1184
      %1622 = vmatprep.subr.bf16.mxu0 0
      %1623 = vmatpush1.bf16.msra.mxu0 %v1185
      %1624 = vmatprep.subr.bf16.mxu0 0
      %1625 = vmatpush1.bf16.msra.mxu0 %v1186
      %1626 = vmatprep.subr.bf16.mxu0 0
      %1627 = vmatpush1.bf16.msra.mxu0 %v1187
      %1628 = vmatprep.mubr.bf16.mxu0 %v531
      %1629 = vmatmul.mubr.bf16.gmra.mrb[0].mxu0 %v530
      %v1630 = vpop.f32.mrb[0].mxu0
      %v1631 = vadd.f32 %v1591, %v1630
      %v1632 = vpop.f32.mrb[0].mxu0
      %v1633 = vpop.f32.mrb[0].mxu0
      %v1634 = vpop.f32.mrb[0].mxu0
      %1635 = vdwg.mxu0
      %1636 = vst [vmem:[%s219] sm:$0xff] %v1631
      %p1637 = scmp.lt.s32.totalorder %s18, 1
      %s1638 = scalar_select %p1637, %s18, 1
      %p1639 = scmp.lt.s32.totalorder %s19, 0
      %s1640 = scalar_select %p1639, %s19, 0
      %s1641 = sadd.s32 %s1640, %s1638
      %s1642 = smul.addr %s1641, 8
      %s1643 = scalar_lea.vmem %s3, %s1642
      // Predicated region
      $region33: #{patch_embed_3d.1} parent=31 // pred_check
        %p1644 = pneg %p124
      $region34: #{patch_embed_3d.1} parent=31 // pred_check_branch
        %1646 = sbr.rel (%p1644) target = $region36
      $region35: #{patch_embed_3d.1} parent=31 // pred_region
        _
      $region36: #{patch_embed_3d.1} parent=31 // pred_fallthru
        _
    $region32: #{patch_embed_3d.1} parent=5 // pred_fallthru
      _
    %p1647 = scmp.le.s32.totalorder 2, %s9
    // Predicated region
    $region37: #{patch_embed_3d.1} parent=5 // pred_check
      %p1648 = pneg %p1647
    $region38: #{patch_embed_3d.1} parent=5 // pred_check_branch
      %1650 = sbr.rel (%p1648) target = $region40
    $region39: #{patch_embed_3d.1} parent=5 // pred_region
      %s1651 = ssub.s32 %s9, 2
      // Predicated region
      $region41: #{patch_embed_3d.1} parent=39 // pred_check
        %p1652 = pneg %p130
      $region42: #{patch_embed_3d.1} parent=39 // pred_check_branch
        %1654 = sbr.rel (%p1652) target = $region44
      $region43: #{patch_embed_3d.1} parent=39 // pred_region
        %p1655 = scmp.lt.s32.totalorder %s20, 1
        %s1656 = scalar_select %p1655, %s20, 1
        %p1657 = scmp.lt.s32.totalorder %s21, 0
        %s1658 = scalar_select %p1657, %s21, 0
        %s1659 = sadd.s32 %s1658, %s1656
        %s1660 = smul.addr %s1659, 8
        %s1661 = scalar_lea.vmem %s3, %s1660
      $region44: #{patch_embed_3d.1} parent=39 // pred_fallthru
        _
    $region40: #{patch_embed_3d.1} parent=5 // pred_fallthru
      _
  $region6: #{patch_embed_3d.1} parent=0 // loop_footer
    %s13 = sadd.s32 1, %s9
  $region7: #{patch_embed_3d.1} parent=0 // loop_footer_branch
    %8 = sbr.rel target = $region3
  $region8: #{patch_embed_3d.1} parent=0 // loop_exit
    _

</llo_original>
